<compile_context>
chip_gen: v5e
topology: v5e:2x2
jax: 0.10.0
libtpu: 0.0.40
codegen_flags: <defaults>
</compile_context>

<pallas_src>
import jax
import jax.numpy as jnp
from jax.experimental import pallas as pl
from jax.experimental.pallas import tpu as pltpu

LATENT = 32      # net1 input width
HIDDEN = 64      # hidden width of both sub-nets
FEAT = 32        # net1 output / net2 input width
OUT = 1          # net2 output (discriminator probability)
OUT_PAD = 128    # final-layer lane padding (free on every MXU width)
LANE = 128       # batch rows folded onto lanes in the compacted output
TILE_QUANTUM = 8 * LANE   # 1024: multi-tile blocks keep (tile_b//LANE) % 8 == 0


# ----------------------------- kernel ---------------------------------------
def chain_kernel(x_ref,
                 w1_ref, b1_ref, w2_ref, b2_ref,    # net1 params (w* bf16, b* f32)
                 w3_ref, b3_ref, w4_ref, b4_ref,    # net2 params (w4/b4 lane-padded)
                 out_ref):
    # x arrives as f32; cast here (no separate wrapper-side XLA cast pass).
    x = x_ref[...].astype(jnp.bfloat16)                        # (TILE_B, LATENT)

    # ---- net1: Linear -> ReLU -> Linear -> tanh ----
    h1 = jnp.dot(x, w1_ref[...], preferred_element_type=jnp.float32) + b1_ref[...]
    h1 = jnp.maximum(h1, 0.0).astype(jnp.bfloat16)             # ReLU, back to bf16 for MXU
    g = jnp.tanh(jnp.dot(h1, w2_ref[...], preferred_element_type=jnp.float32) + b2_ref[...])
    g = g.astype(jnp.bfloat16)                                  # generator output

    # ---- net2: Linear -> ReLU -> Linear -> sigmoid ----
    h2 = jnp.dot(g, w3_ref[...], preferred_element_type=jnp.float32) + b3_ref[...]
    h2 = jnp.maximum(h2, 0.0).astype(jnp.bfloat16)
    logits = jnp.dot(h2, w4_ref[...], preferred_element_type=jnp.float32) + b4_ref[...]
    # logits: (TILE_B, OUT_PAD) f32, only column 0 is valid.

    # ---- output compaction: move the valid column onto lanes ----------------
    # 128x128 XLU transposes (idle slot); compacted tile is (TILE_B//128, 128)
    # with batch on lanes -> 4 B/batch-row HBM writeback instead of 512 B.
    n_sub = out_ref.shape[0]                                    # TILE_B // 128
    rows = []
    for gi in range(n_sub):                                     # static unroll
        blk_t = logits[gi * LANE:(gi + 1) * LANE, :].T          # (128, 128) transpose
        rows.append(blk_t[0:1, :])                              # valid logits, lane-dense
    compact = jnp.concatenate(rows, axis=0)                     # (n_sub, 128)

    # sigmoid(x) = 0.5 * (tanh(x/2) + 1): single EUP op on the compacted tile,
    # no divide and no exp overflow for very negative logits.
    out_ref[...] = (0.5 * (jnp.tanh(0.5 * compact) + 1.0)).astype(out_ref.dtype)


# ----------------------------- wrapper ---------------------------------------
def pack_params(params):
    """Cast weights to bf16 and lane-pad the final layer to OUT_PAD columns.
    Call ONCE (e.g. at init); reuse the packed tuple across forward calls."""
    (w1, b1, w2, b2, w3, b3, w4, b4) = params
    w4p = jnp.zeros((HIDDEN, OUT_PAD), jnp.float32).at[:, :OUT].set(w4)
    b4p = jnp.zeros((1, OUT_PAD), jnp.float32).at[:, :OUT].set(b4)
    bf = lambda w: w.astype(jnp.bfloat16)
    return (bf(w1), b1, bf(w2), b2, bf(w3), b3, bf(w4p), b4p)


def _round_up(v, m):
    return ((v + m - 1) // m) * m


def _pick_tile_b(B, max_tile_b):
    if B < 2 * TILE_QUANTUM:
        # Single grid step: the out block equals the full array, so the
        # sublane-%8 constraint on the compacted block does not apply.
        return _round_up(B, LANE)
    # Multi-tile: tile_b must be a multiple of 1024 so the compacted out block
    # keeps its sublane dim divisible by 8, and we keep >= 2 grid steps so
    # both of v7x's TensorCores get work.
    tile_b = (B // 2) // TILE_QUANTUM * TILE_QUANTUM
    return max(TILE_QUANTUM, min(max_tile_b, tile_b))


def _chain_pallas(x_f32, packed, tile_b, n_tiles):
    (w1, b1, w2, b2, w3, b3, w4p, b4p) = packed
    b_pad = n_tiles * tile_b
    resident = lambda i: (0, 0)   # constant block -> stays VMEM-resident across the grid
    out = pl.pallas_call(
        chain_kernel,
        out_shape=jax.ShapeDtypeStruct((b_pad // LANE, LANE), jnp.float32),
        grid=(n_tiles,),
        in_specs=[
            pl.BlockSpec((tile_b, LATENT), lambda i: (i, 0)),    # x: tiled on batch (f32)
            pl.BlockSpec((LATENT, HIDDEN), resident),            # w1
            pl.BlockSpec((1, HIDDEN), resident),                 # b1
            pl.BlockSpec((HIDDEN, FEAT), resident),              # w2
            pl.BlockSpec((1, FEAT), resident),                   # b2
            pl.BlockSpec((FEAT, HIDDEN), resident),              # w3
            pl.BlockSpec((1, HIDDEN), resident),                 # b3
            pl.BlockSpec((HIDDEN, OUT_PAD), resident),           # w4 (lane-padded)
            pl.BlockSpec((1, OUT_PAD), resident),                # b4 (lane-padded)
        ],
        out_specs=pl.BlockSpec((tile_b // LANE, LANE), lambda i: (i, 0)),
        compiler_params=pltpu.CompilerParams(
            # batch axis is embarrassingly parallel -> shards across v7x's 2 TCs
            dimension_semantics=("parallel",),
        ),
    )(x_f32, w1, b1, w2, b2, w3, b3, w4p, b4p)
    return out   # (b_pad // 128, 128): out[g, i] = prob of batch row g*128 + i


def chain_forward(x, params, packed, *, max_tile_b=4096, min_kernel_batch=256):
    """Fused Chain forward.  `packed` = pack_params(params): computed once and
    reused so the bf16 cast / lane-pad never sits on the per-call path."""
    B = x.shape[0]
    if B < min_kernel_batch:
        # Tiny batches: pallas dispatch overhead loses to a fused XLA chain.
        return chain_reference(x, params)
    tile_b = _pick_tile_b(B, max_tile_b)
    n_tiles = pl.cdiv(B, tile_b)
    b_pad = n_tiles * tile_b
    if b_pad != B:
        # TODO(synk): ragged multi-tile batches still materialize a padded copy
        # of x; a masked tail tile in-kernel would avoid this extra HBM pass.
        x = jnp.pad(x, ((0, b_pad - B), (0, 0)))
    out = _chain_pallas(x, packed, tile_b, n_tiles)
    # Compacted, lane-dense output -> cheap flat slice back to (B, 1).
    return out.reshape(-1)[:B].reshape(B, OUT)


# ----------------------------- params / references ---------------------------
def init_params(key, latent=LATENT, hidden=HIDDEN, feat=FEAT, out=OUT):
    ks = jax.random.split(key, 8)
    def lin(kw, kb, fan_in, fan_out):
        bound = 1.0 / jnp.sqrt(fan_in)    # torch.nn.Linear default-like init
        w = jax.random.uniform(kw, (fan_in, fan_out), jnp.float32, -bound, bound)
        b = jax.random.uniform(kb, (1, fan_out), jnp.float32, -bound, bound)
        return w, b
    w1, b1 = lin(ks[0], ks[1], latent, hidden)   # net1 layer 1
    w2, b2 = lin(ks[2], ks[3], hidden, feat)     # net1 layer 2
    w3, b3 = lin(ks[4], ks[5], feat, hidden)     # net2 layer 1
    w4, b4 = lin(ks[6], ks[7], hidden, out)      # net2 layer 2
    return (w1, b1, w2, b2, w3, b3, w4, b4)


def chain_reference(x, params):
    """Pure-f32 reference (original module semantics)."""
    (w1, b1, w2, b2, w3, b3, w4, b4) = params
    h1 = jnp.maximum(x @ w1 + b1, 0.0)
    g = jnp.tanh(h1 @ w2 + b2)
    h2 = jnp.maximum(g @ w3 + b3, 0.0)
    return jax.nn.sigmoid(h2 @ w4 + b4)


def chain_reference_bf16(x, params):
    """Reference matching the kernel's numerics (bf16 operands, f32 accum)."""
    (w1, b1, w2, b2, w3, b3, w4, b4) = params
    bf, f32 = jnp.bfloat16, jnp.float32
    xb = x.astype(bf)
    h1 = jnp.maximum(jnp.dot(xb, w1.astype(bf), preferred_element_type=f32) + b1, 0.0)
    g = jnp.tanh(jnp.dot(h1.astype(bf), w2.astype(bf), preferred_element_type=f32) + b2)
    h2 = jnp.maximum(jnp.dot(g.astype(bf), w3.astype(bf), preferred_element_type=f32) + b3, 0.0)
    logits = jnp.dot(h2.astype(bf), w4.astype(bf), preferred_element_type=f32) + b4
    return jax.nn.sigmoid(logits)


# ----------------------------- test ------------------------------------------
if __name__ == "__main__":
    key = jax.random.PRNGKey(0)
    kx1, kx2, kp = jax.random.split(key, 3)

    params = init_params(kp)
    packed = pack_params(params)       # hoisted: pack once, reuse across calls

    # -- small batch: single-tile path (grid=(1,), out block == full array) ----
    B1 = 256
    x1 = jax.random.normal(kx1, (B1, LATENT), jnp.float32)
    out1 = jax.block_until_ready(chain_forward(x1, params, packed))
    assert out1.shape == (B1, OUT)
    assert bool(jnp.all(jnp.isfinite(out1)))
    ref1_bf16 = chain_reference_bf16(x1, params)   # kernel-equivalent numerics
    ref1_f32 = chain_reference(x1, params)         # original module semantics
    assert bool(jnp.allclose(out1, ref1_bf16, atol=5e-3, rtol=0.0)), \
        float(jnp.max(jnp.abs(out1 - ref1_bf16)))
    assert bool(jnp.allclose(out1, ref1_f32, atol=5e-2, rtol=0.0))

    # -- larger ragged batch: multi-tile path (tile_b=1024, grid=(3,)) ---------
    B2 = 2304
    x2 = jax.random.normal(kx2, (B2, LATENT), jnp.float32)
    out2 = jax.block_until_ready(chain_forward(x2, params, packed))
    assert out2.shape == (B2, OUT)
    ref2_bf16 = chain_reference_bf16(x2, params)
    assert bool(jnp.allclose(out2, ref2_bf16, atol=5e-3, rtol=0.0)), \
        float(jnp.max(jnp.abs(out2 - ref2_bf16)))

    # -- tiny batch: falls back to the fused XLA path ---------------------------
    out0 = jax.block_until_ready(chain_forward(x1[:16], params, packed))
    assert out0.shape == (16, OUT)

    print("KERNEL_OK")
</pallas_src>

<mosaic_0001>
module attributes {stable_mosaic.version = 11 : i64} {
  func.func @chain_kernel(%arg0: i32, %arg1: memref<256x32xf32, #tpu.memory_space<vmem>>, %arg2: memref<32x64xbf16, #tpu.memory_space<vmem>>, %arg3: memref<1x64xf32, #tpu.memory_space<vmem>>, %arg4: memref<64x32xbf16, #tpu.memory_space<vmem>>, %arg5: memref<1x32xf32, #tpu.memory_space<vmem>>, %arg6: memref<32x64xbf16, #tpu.memory_space<vmem>>, %arg7: memref<1x64xf32, #tpu.memory_space<vmem>>, %arg8: memref<64x128xbf16, #tpu.memory_space<vmem>>, %arg9: memref<1x128xf32, #tpu.memory_space<vmem>>, %arg10: memref<2x128xf32, #tpu.memory_space<vmem>>) attributes {dimension_semantics = [#tpu.dimension_semantics<parallel>], iteration_bounds = array<i64: 1>, scalar_prefetch = 0 : i64, scratch_operands = 0 : i64, tpu.core_type = #tpu.core_type<tc>, window_params = [{transform_indices = @transform_0, window_bounds = array<i64: 256, 32>}, {pipeline_mode = #tpu.pipeline_mode<synchronous>, transform_indices = @transform_1, window_bounds = array<i64: 32, 64>}, {pipeline_mode = #tpu.pipeline_mode<synchronous>, transform_indices = @transform_2, window_bounds = array<i64: 1, 64>}, {pipeline_mode = #tpu.pipeline_mode<synchronous>, transform_indices = @transform_3, window_bounds = array<i64: 64, 32>}, {pipeline_mode = #tpu.pipeline_mode<synchronous>, transform_indices = @transform_4, window_bounds = array<i64: 1, 32>}, {pipeline_mode = #tpu.pipeline_mode<synchronous>, transform_indices = @transform_5, window_bounds = array<i64: 32, 64>}, {pipeline_mode = #tpu.pipeline_mode<synchronous>, transform_indices = @transform_6, window_bounds = array<i64: 1, 64>}, {pipeline_mode = #tpu.pipeline_mode<synchronous>, transform_indices = @transform_7, window_bounds = array<i64: 64, 128>}, {pipeline_mode = #tpu.pipeline_mode<synchronous>, transform_indices = @transform_8, window_bounds = array<i64: 1, 128>}, {transform_indices = @transform_9, window_bounds = array<i64: 2, 128>}]} {
    %c0 = arith.constant 0 : index
    %c0_0 = arith.constant 0 : index
    %0 = vector.load %arg1[%c0, %c0_0] : memref<256x32xf32, #tpu.memory_space<vmem>>, vector<256x32xf32>
    %1 = arith.truncf %0 : vector<256x32xf32> to vector<256x32xbf16>
    %c0_1 = arith.constant 0 : index
    %c0_2 = arith.constant 0 : index
    %2 = vector.load %arg2[%c0_1, %c0_2] : memref<32x64xbf16, #tpu.memory_space<vmem>>, vector<32x64xbf16>
    %cst = arith.constant dense<0.000000e+00> : vector<256x64xf32>
    %3 = tpu.matmul %1, %2, %cst {dimension_numbers = #tpu.dot_dimension_numbers<[1], [0], [0], [1], [0, 0, 1, 1], [], []>} : vector<256x32xbf16>, vector<32x64xbf16>, vector<256x64xf32> -> vector<256x64xf32>
    %c0_3 = arith.constant 0 : index
    %c0_4 = arith.constant 0 : index
    %4 = vector.load %arg3[%c0_3, %c0_4] : memref<1x64xf32, #tpu.memory_space<vmem>>, vector<1x64xf32>
    %5 = vector.broadcast %4 : vector<1x64xf32> to vector<256x64xf32>
    %6 = arith.addf %3, %5 : vector<256x64xf32>
    %cst_5 = arith.constant 0.000000e+00 : f32
    %7 = vector.broadcast %cst_5 : f32 to vector<256x64xf32>
    %8 = arith.maximumf %6, %7 : vector<256x64xf32>
    %9 = arith.truncf %8 : vector<256x64xf32> to vector<256x64xbf16>
    %c0_6 = arith.constant 0 : index
    %c0_7 = arith.constant 0 : index
    %10 = vector.load %arg4[%c0_6, %c0_7] : memref<64x32xbf16, #tpu.memory_space<vmem>>, vector<64x32xbf16>
    %cst_8 = arith.constant dense<0.000000e+00> : vector<256x32xf32>
    %11 = tpu.matmul %9, %10, %cst_8 {dimension_numbers = #tpu.dot_dimension_numbers<[1], [0], [0], [1], [0, 0, 1, 1], [], []>} : vector<256x64xbf16>, vector<64x32xbf16>, vector<256x32xf32> -> vector<256x32xf32>
    %c0_9 = arith.constant 0 : index
    %c0_10 = arith.constant 0 : index
    %12 = vector.load %arg5[%c0_9, %c0_10] : memref<1x32xf32, #tpu.memory_space<vmem>>, vector<1x32xf32>
    %13 = vector.broadcast %12 : vector<1x32xf32> to vector<256x32xf32>
    %14 = arith.addf %11, %13 : vector<256x32xf32>
    %15 = math.tanh %14 : vector<256x32xf32>
    %16 = arith.truncf %15 : vector<256x32xf32> to vector<256x32xbf16>
    %c0_11 = arith.constant 0 : index
    %c0_12 = arith.constant 0 : index
    %17 = vector.load %arg6[%c0_11, %c0_12] : memref<32x64xbf16, #tpu.memory_space<vmem>>, vector<32x64xbf16>
    %cst_13 = arith.constant dense<0.000000e+00> : vector<256x64xf32>
    %18 = tpu.matmul %16, %17, %cst_13 {dimension_numbers = #tpu.dot_dimension_numbers<[1], [0], [0], [1], [0, 0, 1, 1], [], []>} : vector<256x32xbf16>, vector<32x64xbf16>, vector<256x64xf32> -> vector<256x64xf32>
    %c0_14 = arith.constant 0 : index
    %c0_15 = arith.constant 0 : index
    %19 = vector.load %arg7[%c0_14, %c0_15] : memref<1x64xf32, #tpu.memory_space<vmem>>, vector<1x64xf32>
    %20 = vector.broadcast %19 : vector<1x64xf32> to vector<256x64xf32>
    %21 = arith.addf %18, %20 : vector<256x64xf32>
    %cst_16 = arith.constant 0.000000e+00 : f32
    %22 = vector.broadcast %cst_16 : f32 to vector<256x64xf32>
    %23 = arith.maximumf %21, %22 : vector<256x64xf32>
    %24 = arith.truncf %23 : vector<256x64xf32> to vector<256x64xbf16>
    %c0_17 = arith.constant 0 : index
    %c0_18 = arith.constant 0 : index
    %25 = vector.load %arg8[%c0_17, %c0_18] : memref<64x128xbf16, #tpu.memory_space<vmem>>, vector<64x128xbf16>
    %cst_19 = arith.constant dense<0.000000e+00> : vector<256x128xf32>
    %26 = tpu.matmul %24, %25, %cst_19 {dimension_numbers = #tpu.dot_dimension_numbers<[1], [0], [0], [1], [0, 0, 1, 1], [], []>} : vector<256x64xbf16>, vector<64x128xbf16>, vector<256x128xf32> -> vector<256x128xf32>
    %c0_20 = arith.constant 0 : index
    %c0_21 = arith.constant 0 : index
    %27 = vector.load %arg9[%c0_20, %c0_21] : memref<1x128xf32, #tpu.memory_space<vmem>>, vector<1x128xf32>
    %28 = vector.broadcast %27 : vector<1x128xf32> to vector<256x128xf32>
    %29 = arith.addf %26, %28 : vector<256x128xf32>
    %30 = vector.extract_strided_slice %29 {offsets = [0, 0], sizes = [128, 128], strides = [1, 1]} : vector<256x128xf32> to vector<128x128xf32>
    %31 = tpu.transpose %30, [1, 0] : vector<128x128xf32> -> vector<128x128xf32>
    %32 = vector.extract_strided_slice %31 {offsets = [0, 0], sizes = [1, 128], strides = [1, 1]} : vector<128x128xf32> to vector<1x128xf32>
    %33 = vector.extract_strided_slice %29 {offsets = [128, 0], sizes = [128, 128], strides = [1, 1]} : vector<256x128xf32> to vector<128x128xf32>
    %34 = tpu.transpose %33, [1, 0] : vector<128x128xf32> -> vector<128x128xf32>
    %35 = vector.extract_strided_slice %34 {offsets = [0, 0], sizes = [1, 128], strides = [1, 1]} : vector<128x128xf32> to vector<1x128xf32>
    %36 = tpu.concatenate %32, %35 in 0 : vector<1x128xf32>, vector<1x128xf32> -> vector<2x128xf32>
    %cst_22 = arith.constant 5.000000e-01 : f32
    %37 = vector.broadcast %cst_22 : f32 to vector<2x128xf32>
    %38 = arith.mulf %37, %36 : vector<2x128xf32>
    %39 = math.tanh %38 : vector<2x128xf32>
    %cst_23 = arith.constant 1.000000e+00 : f32
    %40 = vector.broadcast %cst_23 : f32 to vector<2x128xf32>
    %41 = arith.addf %39, %40 : vector<2x128xf32>
    %cst_24 = arith.constant 5.000000e-01 : f32
    %42 = vector.broadcast %cst_24 : f32 to vector<2x128xf32>
    %43 = arith.mulf %42, %41 : vector<2x128xf32>
    %c0_25 = arith.constant 0 : index
    %c0_26 = arith.constant 0 : index
    %44 = vector.load %arg10[%c0_25, %c0_26] : memref<2x128xf32, #tpu.memory_space<vmem>>, vector<2x128xf32>
    tpu.vector_store %arg10[%c0_25, %c0_26], %43 {strides = array<i32>} : memref<2x128xf32, #tpu.memory_space<vmem>>, vector<2x128xf32>,
    return
  }
  func.func @transform_0(%arg0: i32) -> (i32, i32) {
    %c0_i32 = arith.constant 0 : i32
    %c0_i32_0 = arith.constant 0 : i32
    return %arg0, %c0_i32 : i32, i32
  }
  func.func @transform_1(%arg0: i32) -> (i32, i32) {
    %c0_i32 = arith.constant 0 : i32
    %c0_i32_0 = arith.constant 0 : i32
    %c0_i32_1 = arith.constant 0 : i32
    return %c0_i32, %c0_i32_0 : i32, i32
  }
  func.func @transform_2(%arg0: i32) -> (i32, i32) {
    %c0_i32 = arith.constant 0 : i32
    %c0_i32_0 = arith.constant 0 : i32
    %c0_i32_1 = arith.constant 0 : i32
    return %c0_i32, %c0_i32_0 : i32, i32
  }
  func.func @transform_3(%arg0: i32) -> (i32, i32) {
    %c0_i32 = arith.constant 0 : i32
    %c0_i32_0 = arith.constant 0 : i32
    %c0_i32_1 = arith.constant 0 : i32
    return %c0_i32, %c0_i32_0 : i32, i32
  }
  func.func @transform_4(%arg0: i32) -> (i32, i32) {
    %c0_i32 = arith.constant 0 : i32
    %c0_i32_0 = arith.constant 0 : i32
    %c0_i32_1 = arith.constant 0 : i32
    return %c0_i32, %c0_i32_0 : i32, i32
  }
  func.func @transform_5(%arg0: i32) -> (i32, i32) {
    %c0_i32 = arith.constant 0 : i32
    %c0_i32_0 = arith.constant 0 : i32
    %c0_i32_1 = arith.constant 0 : i32
    return %c0_i32, %c0_i32_0 : i32, i32
  }
  func.func @transform_6(%arg0: i32) -> (i32, i32) {
    %c0_i32 = arith.constant 0 : i32
    %c0_i32_0 = arith.constant 0 : i32
    %c0_i32_1 = arith.constant 0 : i32
    return %c0_i32, %c0_i32_0 : i32, i32
  }
  func.func @transform_7(%arg0: i32) -> (i32, i32) {
    %c0_i32 = arith.constant 0 : i32
    %c0_i32_0 = arith.constant 0 : i32
    %c0_i32_1 = arith.constant 0 : i32
    return %c0_i32, %c0_i32_0 : i32, i32
  }
  func.func @transform_8(%arg0: i32) -> (i32, i32) {
    %c0_i32 = arith.constant 0 : i32
    %c0_i32_0 = arith.constant 0 : i32
    %c0_i32_1 = arith.constant 0 : i32
    return %c0_i32, %c0_i32_0 : i32, i32
  }
  func.func @transform_9(%arg0: i32) -> (i32, i32) {
    %c0_i32 = arith.constant 0 : i32
    %c0_i32_0 = arith.constant 0 : i32
    return %arg0, %c0_i32 : i32, i32
  }
}

</mosaic_0001>

<llo_original>
// kernel: tpu_custom_call.1
$region0: #{tpu_custom_call.1}
  #allocation0 [shape = 'u32[]', space=smem, size = 0x4, offset = 0x4, fixed_abs, tag = 'smem constant byte address 0x4 - core index']
  #allocation1 [shape = 'u32[72,128]{1,0:T(1,128)}', space=vmem, size = 0x9000, scoped, tag = 'internal scratch']
  %s0 = inlined_call_operand.vmem [shape: f32[256,32], index: 0, kind: input, shape index: {}]
  %s1 = inlined_call_operand.vmem [shape: bf16[32,64], index: 1, kind: input, shape index: {}]
  %s2 = inlined_call_operand.vmem [shape: f32[1,64], index: 2, kind: input, shape index: {}]
  %s3 = inlined_call_operand.vmem [shape: bf16[64,32], index: 3, kind: input, shape index: {}]
  %s4 = inlined_call_operand.vmem [shape: f32[1,32], index: 4, kind: input, shape index: {}]
  %s5 = inlined_call_operand.vmem [shape: bf16[32,64], index: 5, kind: input, shape index: {}]
  %s6 = inlined_call_operand.vmem [shape: f32[1,64], index: 6, kind: input, shape index: {}]
  %s7 = inlined_call_operand.vmem [shape: bf16[64,128], index: 7, kind: input, shape index: {}]
  %s8 = inlined_call_operand.vmem [shape: f32[1,128], index: 8, kind: input, shape index: {}]
  %s9 = inlined_call_operand.hbm [shape: f32[2,128], index: 9, kind: output, shape index: {}]
  %s10 = sld [smem:[#allocation0]]
  $region46: #{tpu_custom_call.1} parent=0
    _
  %s12 = ssub.s32 1, %s10
  %s13 = scalar_select 0, %s12, %s10
  $region1: #{tpu_custom_call.1} parent=0
    #allocation2 [shape = 'u8[1024]{0}', space=vmem, size = 0x400, scoped, tag = 'output window, operand 0, single buffered']
    #allocation3 [shape = 's32[1]{0}', space=sflag, size = 0x4, scoped, tag = 'scoped memory for tpu_custom_call.1']
    %14 = vsyncpa [#allocation3], 0
    // Predicated region
    $region2: #{tpu_custom_call.1} parent=1 // pred_check
      _
    $region3: #{tpu_custom_call.1} parent=1 // pred_check_branch
      %16 = sbr.rel (0) target = $region5
    $region4: #{tpu_custom_call.1} parent=1 // pred_region
      _
    $region5: #{tpu_custom_call.1} parent=1 // pred_fallthru
      _
    // Predicated region
    $region6: #{tpu_custom_call.1} parent=1 // pred_check
      _
    $region7: #{tpu_custom_call.1} parent=1 // pred_check_branch
      %18 = sbr.rel (0) target = $region9
    $region8: #{tpu_custom_call.1} parent=1 // pred_region
      _
    $region9: #{tpu_custom_call.1} parent=1 // pred_fallthru
      _
    // Predicated region
    $region10: #{tpu_custom_call.1} parent=1 // pred_check
      _
    $region11: #{tpu_custom_call.1} parent=1 // pred_check_branch
      %20 = sbr.rel (0) target = $region13
    $region12: #{tpu_custom_call.1} parent=1 // pred_region
      _
    $region13: #{tpu_custom_call.1} parent=1 // pred_fallthru
      _
    // Predicated region
    $region14: #{tpu_custom_call.1} parent=1 // pred_check
      _
    $region15: #{tpu_custom_call.1} parent=1 // pred_check_branch
      %22 = sbr.rel (0) target = $region17
    $region16: #{tpu_custom_call.1} parent=1 // pred_region
      _
    $region17: #{tpu_custom_call.1} parent=1 // pred_fallthru
      _
    // Predicated region
    $region18: #{tpu_custom_call.1} parent=1 // pred_check
      _
    $region19: #{tpu_custom_call.1} parent=1 // pred_check_branch
      %24 = sbr.rel (0) target = $region21
    $region20: #{tpu_custom_call.1} parent=1 // pred_region
      _
    $region21: #{tpu_custom_call.1} parent=1 // pred_fallthru
      _
    // Predicated region
    $region22: #{tpu_custom_call.1} parent=1 // pred_check
      _
    $region23: #{tpu_custom_call.1} parent=1 // pred_check_branch
      %26 = sbr.rel (0) target = $region25
    $region24: #{tpu_custom_call.1} parent=1 // pred_region
      _
    $region25: #{tpu_custom_call.1} parent=1 // pred_fallthru
      _
    // Predicated region
    $region26: #{tpu_custom_call.1} parent=1 // pred_check
      _
    $region27: #{tpu_custom_call.1} parent=1 // pred_check_branch
      %28 = sbr.rel (0) target = $region29
    $region28: #{tpu_custom_call.1} parent=1 // pred_region
      _
    $region29: #{tpu_custom_call.1} parent=1 // pred_fallthru
      _
    // Predicated region
    $region30: #{tpu_custom_call.1} parent=1 // pred_check
      _
    $region31: #{tpu_custom_call.1} parent=1 // pred_check_branch
      %30 = sbr.rel (0) target = $region33
    $region32: #{tpu_custom_call.1} parent=1 // pred_region
      _
    $region33: #{tpu_custom_call.1} parent=1 // pred_fallthru
      _
    // Predicated region
    $region34: #{tpu_custom_call.1} parent=1 // pred_check
      _
    $region35: #{tpu_custom_call.1} parent=1 // pred_check_branch
      %32 = sbr.rel (0) target = $region37
    $region36: #{tpu_custom_call.1} parent=1 // pred_region
      _
    $region37: #{tpu_custom_call.1} parent=1 // pred_fallthru
      _
    %v34 = vld [vmem:[%s0] sm:$0xff]
    %v35 = vld [vmem:[%s0 + $0x8] sm:$0xff]
    %v36 = vld [vmem:[%s0 + $0x10] sm:$0xff]
    %v37 = vld [vmem:[%s0 + $0x18] sm:$0xff]
    %v38 = vld [vmem:[%s0 + $0x20] sm:$0xff]
    %v39 = vld [vmem:[%s0 + $0x28] sm:$0xff]
    %v40 = vld [vmem:[%s0 + $0x30] sm:$0xff]
    %v41 = vld [vmem:[%s0 + $0x38] sm:$0xff]
    %v42 = vld [vmem:[%s0 + $0x40] sm:$0xff]
    %v43 = vld [vmem:[%s0 + $0x48] sm:$0xff]
    %v44 = vld [vmem:[%s0 + $0x50] sm:$0xff]
    %v45 = vld [vmem:[%s0 + $0x58] sm:$0xff]
    %v46 = vld [vmem:[%s0 + $0x60] sm:$0xff]
    %v47 = vld [vmem:[%s0 + $0x68] sm:$0xff]
    %v48 = vld [vmem:[%s0 + $0x70] sm:$0xff]
    %v49 = vld [vmem:[%s0 + $0x78] sm:$0xff]
    %v50 = vld [vmem:[%s0 + $0x80] sm:$0xff]
    %v51 = vld [vmem:[%s0 + $0x88] sm:$0xff]
    %v52 = vld [vmem:[%s0 + $0x90] sm:$0xff]
    %v53 = vld [vmem:[%s0 + $0x98] sm:$0xff]
    %v54 = vld [vmem:[%s0 + $0xa0] sm:$0xff]
    %v55 = vld [vmem:[%s0 + $0xa8] sm:$0xff]
    %v56 = vld [vmem:[%s0 + $0xb0] sm:$0xff]
    %v57 = vld [vmem:[%s0 + $0xb8] sm:$0xff]
    %v58 = vld [vmem:[%s0 + $0xc0] sm:$0xff]
    %v59 = vld [vmem:[%s0 + $0xc8] sm:$0xff]
    %v60 = vld [vmem:[%s0 + $0xd0] sm:$0xff]
    %v61 = vld [vmem:[%s0 + $0xd8] sm:$0xff]
    %v62 = vld [vmem:[%s0 + $0xe0] sm:$0xff]
    %v63 = vld [vmem:[%s0 + $0xe8] sm:$0xff]
    %v64 = vld [vmem:[%s0 + $0xf0] sm:$0xff]
    %v65 = vld [vmem:[%s0 + $0xf8] sm:$0xff]
    %v66 = vpack.c.bf16 %v35, %v34
    %v67 = vpack.c.bf16 %v37, %v36
    %v68 = vpack.c.bf16 %v39, %v38
    %v69 = vpack.c.bf16 %v41, %v40
    %v70 = vpack.c.bf16 %v43, %v42
    %v71 = vpack.c.bf16 %v45, %v44
    %v72 = vpack.c.bf16 %v47, %v46
    %v73 = vpack.c.bf16 %v49, %v48
    %v74 = vpack.c.bf16 %v51, %v50
    %v75 = vpack.c.bf16 %v53, %v52
    %v76 = vpack.c.bf16 %v55, %v54
    %v77 = vpack.c.bf16 %v57, %v56
    %v78 = vpack.c.bf16 %v59, %v58
    %v79 = vpack.c.bf16 %v61, %v60
    %v80 = vpack.c.bf16 %v63, %v62
    %v81 = vpack.c.bf16 %v65, %v64
    %v82 = vld [vmem:[%s1] sm:$0xf]
    %v83 = vld [vmem:[%s1 + $0x4] sm:$0xf]
    %v84 = vld [vmem:[%s1 + $0x8] sm:$0xf]
    %v85 = vld [vmem:[%s1 + $0xc] sm:$0xf]
    %v86 = vld [vmem:[%s2] sm:$0x1]
    %v88 = vperm.slane %v86, 0
    %v94 = vunpack.c.l.b16 %v82
    %v95 = vunpack.c.l.b16 %v83
    %v96 = vunpack.c.l.b16 %v84
    %v97 = vunpack.c.l.b16 %v85
    %v98 = vpack.c.b16 %v95, %v94
    %v99 = vpack.c.b16 %v97, %v96
    %vm102 = vcmask 261120
    %v104 = vsel %vm102, %v66, 0
    %v107 = vsel %vm102, %v67, 0
    %v110 = vsel %vm102, %v68, 0
    %v113 = vsel %vm102, %v69, 0
    %v116 = vsel %vm102, %v70, 0
    %v119 = vsel %vm102, %v71, 0
    %v122 = vsel %vm102, %v72, 0
    %v125 = vsel %vm102, %v73, 0
    %v128 = vsel %vm102, %v74, 0
    %v131 = vsel %vm102, %v75, 0
    %v134 = vsel %vm102, %v76, 0
    %v137 = vsel %vm102, %v77, 0
    %v140 = vsel %vm102, %v78, 0
    %v143 = vsel %vm102, %v79, 0
    %v146 = vsel %vm102, %v80, 0
    %v149 = vsel %vm102, %v81, 0
    %151 = vmatpush.bf16.msra.mxu0 0
    %152 = vmatpush.bf16.msra.mxu0 0
    %153 = vmatpush.bf16.msra.mxu0 0
    %154 = vmatpush.bf16.msra.mxu0 0
    %155 = vmatpush.bf16.msra.mxu0 0
    %156 = vmatpush.bf16.msra.mxu0 0
    %157 = vmatpush.bf16.msra.mxu0 %v99
    %158 = vmatpush.bf16.msra.mxu0 %v98
    %159 = vmatmul.bf16.gmra.mxu0 %v104
    %v160 = vpop.f32.mrf.mxu0
    %v161 = vadd.f32 %v88, %v160
    %v162 = vpop.f32.mrf.mxu0
    %v163 = vadd.f32 %v88, %v162
    %164 = vmatmul.bf16.gmra.mxu0 %v107
    %v165 = vpop.f32.mrf.mxu0
    %v166 = vadd.f32 %v88, %v165
    %v167 = vpop.f32.mrf.mxu0
    %v168 = vadd.f32 %v88, %v167
    %169 = vmatmul.bf16.gmra.mxu0 %v110
    %v170 = vpop.f32.mrf.mxu0
    %v171 = vadd.f32 %v88, %v170
    %v172 = vpop.f32.mrf.mxu0
    %v173 = vadd.f32 %v88, %v172
    %174 = vmatmul.bf16.gmra.mxu0 %v113
    %v175 = vpop.f32.mrf.mxu0
    %v176 = vadd.f32 %v88, %v175
    %v177 = vpop.f32.mrf.mxu0
    %v178 = vadd.f32 %v88, %v177
    %179 = vmatmul.bf16.gmra.mxu0 %v116
    %v180 = vpop.f32.mrf.mxu0
    %v181 = vadd.f32 %v88, %v180
    %v182 = vpop.f32.mrf.mxu0
    %v183 = vadd.f32 %v88, %v182
    %184 = vmatmul.bf16.gmra.mxu0 %v119
    %v185 = vpop.f32.mrf.mxu0
    %v186 = vadd.f32 %v88, %v185
    %v187 = vpop.f32.mrf.mxu0
    %v188 = vadd.f32 %v88, %v187
    %189 = vmatmul.bf16.gmra.mxu0 %v122
    %v190 = vpop.f32.mrf.mxu0
    %v191 = vadd.f32 %v88, %v190
    %v192 = vpop.f32.mrf.mxu0
    %v193 = vadd.f32 %v88, %v192
    %194 = vmatmul.bf16.gmra.mxu0 %v125
    %v195 = vpop.f32.mrf.mxu0
    %v196 = vadd.f32 %v88, %v195
    %v197 = vpop.f32.mrf.mxu0
    %v198 = vadd.f32 %v88, %v197
    %199 = vmatmul.bf16.gmra.mxu0 %v128
    %v200 = vpop.f32.mrf.mxu0
    %v201 = vadd.f32 %v88, %v200
    %v202 = vpop.f32.mrf.mxu0
    %v203 = vadd.f32 %v88, %v202
    %204 = vmatmul.bf16.gmra.mxu0 %v131
    %v205 = vpop.f32.mrf.mxu0
    %v206 = vadd.f32 %v88, %v205
    %v207 = vpop.f32.mrf.mxu0
    %v208 = vadd.f32 %v88, %v207
    %209 = vmatmul.bf16.gmra.mxu0 %v134
    %v210 = vpop.f32.mrf.mxu0
    %v211 = vadd.f32 %v88, %v210
    %v212 = vpop.f32.mrf.mxu0
    %v213 = vadd.f32 %v88, %v212
    %214 = vmatmul.bf16.gmra.mxu0 %v137
    %v215 = vpop.f32.mrf.mxu0
    %v216 = vadd.f32 %v88, %v215
    %v217 = vpop.f32.mrf.mxu0
    %v218 = vadd.f32 %v88, %v217
    %219 = vmatmul.bf16.gmra.mxu0 %v140
    %v220 = vpop.f32.mrf.mxu0
    %v221 = vadd.f32 %v88, %v220
    %v222 = vpop.f32.mrf.mxu0
    %v223 = vadd.f32 %v88, %v222
    %224 = vmatmul.bf16.gmra.mxu0 %v143
    %v225 = vpop.f32.mrf.mxu0
    %v226 = vadd.f32 %v88, %v225
    %v227 = vpop.f32.mrf.mxu0
    %v228 = vadd.f32 %v88, %v227
    %229 = vmatmul.bf16.gmra.mxu0 %v146
    %v230 = vpop.f32.mrf.mxu0
    %v231 = vadd.f32 %v88, %v230
    %v232 = vpop.f32.mrf.mxu0
    %v233 = vadd.f32 %v88, %v232
    %234 = vmatmul.bf16.gmra.mxu0 %v149
    %v235 = vpop.f32.mrf.mxu0
    %v236 = vadd.f32 %v88, %v235
    %v237 = vpop.f32.mrf.mxu0
    %v238 = vadd.f32 %v88, %v237
    %239 = vdwg.mxu0
    %v240 = vmax.f32 %v161, 0.0
    %v241 = vmax.f32 %v163, 0.0
    %v242 = vmax.f32 %v166, 0.0
    %v243 = vmax.f32 %v168, 0.0
    %v244 = vmax.f32 %v171, 0.0
    %v245 = vmax.f32 %v173, 0.0
    %v246 = vmax.f32 %v176, 0.0
    %v247 = vmax.f32 %v178, 0.0
    %v248 = vmax.f32 %v181, 0.0
    %v249 = vmax.f32 %v183, 0.0
    %v250 = vmax.f32 %v186, 0.0
    %v251 = vmax.f32 %v188, 0.0
    %v252 = vmax.f32 %v191, 0.0
    %v253 = vmax.f32 %v193, 0.0
    %v254 = vmax.f32 %v196, 0.0
    %v255 = vmax.f32 %v198, 0.0
    %v256 = vmax.f32 %v201, 0.0
    %v257 = vmax.f32 %v203, 0.0
    %v258 = vmax.f32 %v206, 0.0
    %v259 = vmax.f32 %v208, 0.0
    %v260 = vmax.f32 %v211, 0.0
    %v261 = vmax.f32 %v213, 0.0
    %v262 = vmax.f32 %v216, 0.0
    %v263 = vmax.f32 %v218, 0.0
    %v264 = vmax.f32 %v221, 0.0
    %v265 = vmax.f32 %v223, 0.0
    %v266 = vmax.f32 %v226, 0.0
    %v267 = vmax.f32 %v228, 0.0
    %v268 = vmax.f32 %v231, 0.0
    %v269 = vmax.f32 %v233, 0.0
    %v270 = vmax.f32 %v236, 0.0
    %v271 = vmax.f32 %v238, 0.0
    %v272 = vpack.c.bf16 %v241, %v240
    %v273 = vpack.c.bf16 %v243, %v242
    %v274 = vpack.c.bf16 %v245, %v244
    %v275 = vpack.c.bf16 %v247, %v246
    %v276 = vpack.c.bf16 %v249, %v248
    %v277 = vpack.c.bf16 %v251, %v250
    %v278 = vpack.c.bf16 %v253, %v252
    %v279 = vpack.c.bf16 %v255, %v254
    %v280 = vpack.c.bf16 %v257, %v256
    %v281 = vpack.c.bf16 %v259, %v258
    %v282 = vpack.c.bf16 %v261, %v260
    %v283 = vpack.c.bf16 %v263, %v262
    %v284 = vpack.c.bf16 %v265, %v264
    %v285 = vpack.c.bf16 %v267, %v266
    %v286 = vpack.c.bf16 %v269, %v268
    %v287 = vpack.c.bf16 %v271, %v270
    %v288 = vld [vmem:[%s3] sm:$0xf]
    %v289 = vld [vmem:[%s3 + $0x4] sm:$0xf]
    %v290 = vld [vmem:[%s3 + $0x8] sm:$0xf]
    %v291 = vld [vmem:[%s3 + $0xc] sm:$0xf]
    %v292 = vld [vmem:[%s3 + $0x10] sm:$0xf]
    %v293 = vld [vmem:[%s3 + $0x14] sm:$0xf]
    %v294 = vld [vmem:[%s3 + $0x18] sm:$0xf]
    %v295 = vld [vmem:[%s3 + $0x1c] sm:$0xf]
    %v296 = vld [vmem:[%s4] sm:$0x1]
    %v298 = vperm.slane %v296, 0
    %v308 = vunpack.c.l.b16 %v288
    %v309 = vunpack.c.l.b16 %v289
    %v310 = vunpack.c.l.b16 %v290
    %v311 = vunpack.c.l.b16 %v291
    %v312 = vunpack.c.l.b16 %v292
    %v313 = vunpack.c.l.b16 %v293
    %v314 = vunpack.c.l.b16 %v294
    %v315 = vunpack.c.l.b16 %v295
    %v316 = vpack.c.b16 %v309, %v308
    %v317 = vpack.c.b16 %v311, %v310
    %v318 = vpack.c.b16 %v313, %v312
    %v319 = vpack.c.b16 %v315, %v314
    %vm324 = vcmask 523264
    %v326 = vsel %vm324, %v272, 0
    %v329 = vsel %vm324, %v273, 0
    %v332 = vsel %vm324, %v274, 0
    %v335 = vsel %vm324, %v275, 0
    %v338 = vsel %vm324, %v276, 0
    %v341 = vsel %vm324, %v277, 0
    %v344 = vsel %vm324, %v278, 0
    %v347 = vsel %vm324, %v279, 0
    %v350 = vsel %vm324, %v280, 0
    %v353 = vsel %vm324, %v281, 0
    %v356 = vsel %vm324, %v282, 0
    %v359 = vsel %vm324, %v283, 0
    %v362 = vsel %vm324, %v284, 0
    %v365 = vsel %vm324, %v285, 0
    %v368 = vsel %vm324, %v286, 0
    %v371 = vsel %vm324, %v287, 0
    %373 = vmatpush.bf16.msra.mxu0 0
    %374 = vmatpush.bf16.msra.mxu0 0
    %375 = vmatpush.bf16.msra.mxu0 0
    %376 = vmatpush.bf16.msra.mxu0 0
    %377 = vmatpush.bf16.msra.mxu0 %v319
    %378 = vmatpush.bf16.msra.mxu0 %v318
    %379 = vmatpush.bf16.msra.mxu0 %v317
    %380 = vmatpush.bf16.msra.mxu0 %v316
    %381 = vmatmul.bf16.gmra.mxu0 %v326
    %v382 = vpop.f32.mrf.mxu0
    %v383 = vadd.f32 %v298, %v382
    %v384 = vpop.f32.mrf.mxu0
    %v385 = vadd.f32 %v298, %v384
    %386 = vmatmul.bf16.gmra.mxu0 %v329
    %v387 = vpop.f32.mrf.mxu0
    %v388 = vadd.f32 %v298, %v387
    %v389 = vpop.f32.mrf.mxu0
    %v390 = vadd.f32 %v298, %v389
    %391 = vmatmul.bf16.gmra.mxu0 %v332
    %v392 = vpop.f32.mrf.mxu0
    %v393 = vadd.f32 %v298, %v392
    %v394 = vpop.f32.mrf.mxu0
    %v395 = vadd.f32 %v298, %v394
    %396 = vmatmul.bf16.gmra.mxu0 %v335
    %v397 = vpop.f32.mrf.mxu0
    %v398 = vadd.f32 %v298, %v397
    %v399 = vpop.f32.mrf.mxu0
    %v400 = vadd.f32 %v298, %v399
    %401 = vmatmul.bf16.gmra.mxu0 %v338
    %v402 = vpop.f32.mrf.mxu0
    %v403 = vadd.f32 %v298, %v402
    %v404 = vpop.f32.mrf.mxu0
    %v405 = vadd.f32 %v298, %v404
    %406 = vmatmul.bf16.gmra.mxu0 %v341
    %v407 = vpop.f32.mrf.mxu0
    %v408 = vadd.f32 %v298, %v407
    %v409 = vpop.f32.mrf.mxu0
    %v410 = vadd.f32 %v298, %v409
    %411 = vmatmul.bf16.gmra.mxu0 %v344
    %v412 = vpop.f32.mrf.mxu0
    %v413 = vadd.f32 %v298, %v412
    %v414 = vpop.f32.mrf.mxu0
    %v415 = vadd.f32 %v298, %v414
    %416 = vmatmul.bf16.gmra.mxu0 %v347
    %v417 = vpop.f32.mrf.mxu0
    %v418 = vadd.f32 %v298, %v417
    %v419 = vpop.f32.mrf.mxu0
    %v420 = vadd.f32 %v298, %v419
    %421 = vmatmul.bf16.gmra.mxu0 %v350
    %v422 = vpop.f32.mrf.mxu0
    %v423 = vadd.f32 %v298, %v422
    %v424 = vpop.f32.mrf.mxu0
    %v425 = vadd.f32 %v298, %v424
    %426 = vmatmul.bf16.gmra.mxu0 %v353
    %v427 = vpop.f32.mrf.mxu0
    %v428 = vadd.f32 %v298, %v427
    %v429 = vpop.f32.mrf.mxu0
    %v430 = vadd.f32 %v298, %v429
    %431 = vmatmul.bf16.gmra.mxu0 %v356
    %v432 = vpop.f32.mrf.mxu0
    %v433 = vadd.f32 %v298, %v432
    %v434 = vpop.f32.mrf.mxu0
    %v435 = vadd.f32 %v298, %v434
    %436 = vmatmul.bf16.gmra.mxu0 %v359
    %v437 = vpop.f32.mrf.mxu0
    %v438 = vadd.f32 %v298, %v437
    %v439 = vpop.f32.mrf.mxu0
    %v440 = vadd.f32 %v298, %v439
    %441 = vmatmul.bf16.gmra.mxu0 %v362
    %v442 = vpop.f32.mrf.mxu0
    %v443 = vadd.f32 %v298, %v442
    %v444 = vpop.f32.mrf.mxu0
    %v445 = vadd.f32 %v298, %v444
    %446 = vmatmul.bf16.gmra.mxu0 %v365
    %v447 = vpop.f32.mrf.mxu0
    %v448 = vadd.f32 %v298, %v447
    %v449 = vpop.f32.mrf.mxu0
    %v450 = vadd.f32 %v298, %v449
    %451 = vmatmul.bf16.gmra.mxu0 %v368
    %v452 = vpop.f32.mrf.mxu0
    %v453 = vadd.f32 %v298, %v452
    %v454 = vpop.f32.mrf.mxu0
    %v455 = vadd.f32 %v298, %v454
    %456 = vmatmul.bf16.gmra.mxu0 %v371
    %v457 = vpop.f32.mrf.mxu0
    %v458 = vadd.f32 %v298, %v457
    %v459 = vpop.f32.mrf.mxu0
    %v460 = vadd.f32 %v298, %v459
    %461 = vdwg.mxu0
    %v462 = vtanh.pop %v383
    %v463 = vtanh.pop %v385
    %v464 = vtanh.pop %v388
    %v465 = vtanh.pop %v390
    %v466 = vtanh.pop %v393
    %v467 = vtanh.pop %v395
    %v468 = vtanh.pop %v398
    %v469 = vtanh.pop %v400
    %v470 = vtanh.pop %v403
    %v471 = vtanh.pop %v405
    %v472 = vtanh.pop %v408
    %v473 = vtanh.pop %v410
    %v474 = vtanh.pop %v413
    %v475 = vtanh.pop %v415
    %v476 = vtanh.pop %v418
    %v477 = vtanh.pop %v420
    %v478 = vtanh.pop %v423
    %v479 = vtanh.pop %v425
    %v480 = vtanh.pop %v428
    %v481 = vtanh.pop %v430
    %v482 = vtanh.pop %v433
    %v483 = vtanh.pop %v435
    %v484 = vtanh.pop %v438
    %v485 = vtanh.pop %v440
    %v486 = vtanh.pop %v443
    %v487 = vtanh.pop %v445
    %v488 = vtanh.pop %v448
    %v489 = vtanh.pop %v450
    %v490 = vtanh.pop %v453
    %v491 = vtanh.pop %v455
    %v492 = vtanh.pop %v458
    %v493 = vtanh.pop %v460
    %v494 = vpack.c.bf16 %v463, %v462
    %v495 = vpack.c.bf16 %v465, %v464
    %v496 = vpack.c.bf16 %v467, %v466
    %v497 = vpack.c.bf16 %v469, %v468
    %v498 = vpack.c.bf16 %v471, %v470
    %v499 = vpack.c.bf16 %v473, %v472
    %v500 = vpack.c.bf16 %v475, %v474
    %v501 = vpack.c.bf16 %v477, %v476
    %v502 = vpack.c.bf16 %v479, %v478
    %v503 = vpack.c.bf16 %v481, %v480
    %v504 = vpack.c.bf16 %v483, %v482
    %v505 = vpack.c.bf16 %v485, %v484
    %v506 = vpack.c.bf16 %v487, %v486
    %v507 = vpack.c.bf16 %v489, %v488
    %v508 = vpack.c.bf16 %v491, %v490
    %v509 = vpack.c.bf16 %v493, %v492
    %v510 = vld [vmem:[%s5] sm:$0xf]
    %v511 = vld [vmem:[%s5 + $0x4] sm:$0xf]
    %v512 = vld [vmem:[%s5 + $0x8] sm:$0xf]
    %v513 = vld [vmem:[%s5 + $0xc] sm:$0xf]
    %v514 = vld [vmem:[%s6] sm:$0x1]
    %v516 = vperm.slane %v514, 0
    %v522 = vunpack.c.l.b16 %v510
    %v523 = vunpack.c.l.b16 %v511
    %v524 = vunpack.c.l.b16 %v512
    %v525 = vunpack.c.l.b16 %v513
    %v526 = vpack.c.b16 %v523, %v522
    %v527 = vpack.c.b16 %v525, %v524
    %v531 = vsel %vm102, %v494, 0
    %v534 = vsel %vm102, %v495, 0
    %v537 = vsel %vm102, %v496, 0
    %v540 = vsel %vm102, %v497, 0
    %v543 = vsel %vm102, %v498, 0
    %v546 = vsel %vm102, %v499, 0
    %v549 = vsel %vm102, %v500, 0
    %v552 = vsel %vm102, %v501, 0
    %v555 = vsel %vm102, %v502, 0
    %v558 = vsel %vm102, %v503, 0
    %v561 = vsel %vm102, %v504, 0
    %v564 = vsel %vm102, %v505, 0
    %v567 = vsel %vm102, %v506, 0
    %v570 = vsel %vm102, %v507, 0
    %v573 = vsel %vm102, %v508, 0
    %v576 = vsel %vm102, %v509, 0
    %578 = vmatpush.bf16.msra.mxu0 0
    %579 = vmatpush.bf16.msra.mxu0 0
    %580 = vmatpush.bf16.msra.mxu0 0
    %581 = vmatpush.bf16.msra.mxu0 0
    %582 = vmatpush.bf16.msra.mxu0 0
    %583 = vmatpush.bf16.msra.mxu0 0
    %584 = vmatpush.bf16.msra.mxu0 %v527
    %585 = vmatpush.bf16.msra.mxu0 %v526
    %586 = vmatmul.bf16.gmra.mxu0 %v531
    %v587 = vpop.f32.mrf.mxu0
    %v588 = vadd.f32 %v516, %v587
    %v589 = vpop.f32.mrf.mxu0
    %v590 = vadd.f32 %v516, %v589
    %591 = vmatmul.bf16.gmra.mxu0 %v534
    %v592 = vpop.f32.mrf.mxu0
    %v593 = vadd.f32 %v516, %v592
    %v594 = vpop.f32.mrf.mxu0
    %v595 = vadd.f32 %v516, %v594
    %596 = vmatmul.bf16.gmra.mxu0 %v537
    %v597 = vpop.f32.mrf.mxu0
    %v598 = vadd.f32 %v516, %v597
    %v599 = vpop.f32.mrf.mxu0
    %v600 = vadd.f32 %v516, %v599
    %601 = vmatmul.bf16.gmra.mxu0 %v540
    %v602 = vpop.f32.mrf.mxu0
    %v603 = vadd.f32 %v516, %v602
    %v604 = vpop.f32.mrf.mxu0
    %v605 = vadd.f32 %v516, %v604
    %606 = vmatmul.bf16.gmra.mxu0 %v543
    %v607 = vpop.f32.mrf.mxu0
    %v608 = vadd.f32 %v516, %v607
    %v609 = vpop.f32.mrf.mxu0
    %v610 = vadd.f32 %v516, %v609
    %611 = vmatmul.bf16.gmra.mxu0 %v546
    %v612 = vpop.f32.mrf.mxu0
    %v613 = vadd.f32 %v516, %v612
    %v614 = vpop.f32.mrf.mxu0
    %v615 = vadd.f32 %v516, %v614
    %616 = vmatmul.bf16.gmra.mxu0 %v549
    %v617 = vpop.f32.mrf.mxu0
    %v618 = vadd.f32 %v516, %v617
    %v619 = vpop.f32.mrf.mxu0
    %v620 = vadd.f32 %v516, %v619
    %621 = vmatmul.bf16.gmra.mxu0 %v552
    %v622 = vpop.f32.mrf.mxu0
    %v623 = vadd.f32 %v516, %v622
    %v624 = vpop.f32.mrf.mxu0
    %v625 = vadd.f32 %v516, %v624
    %626 = vmatmul.bf16.gmra.mxu0 %v555
    %v627 = vpop.f32.mrf.mxu0
    %v628 = vadd.f32 %v516, %v627
    %v629 = vpop.f32.mrf.mxu0
    %v630 = vadd.f32 %v516, %v629
    %631 = vmatmul.bf16.gmra.mxu0 %v558
    %v632 = vpop.f32.mrf.mxu0
    %v633 = vadd.f32 %v516, %v632
    %v634 = vpop.f32.mrf.mxu0
    %v635 = vadd.f32 %v516, %v634
    %636 = vmatmul.bf16.gmra.mxu0 %v561
    %v637 = vpop.f32.mrf.mxu0
    %v638 = vadd.f32 %v516, %v637
    %v639 = vpop.f32.mrf.mxu0
    %v640 = vadd.f32 %v516, %v639
    %641 = vmatmul.bf16.gmra.mxu0 %v564
    %v642 = vpop.f32.mrf.mxu0
    %v643 = vadd.f32 %v516, %v642
    %v644 = vpop.f32.mrf.mxu0
    %v645 = vadd.f32 %v516, %v644
    %646 = vmatmul.bf16.gmra.mxu0 %v567
    %v647 = vpop.f32.mrf.mxu0
    %v648 = vadd.f32 %v516, %v647
    %v649 = vpop.f32.mrf.mxu0
    %v650 = vadd.f32 %v516, %v649
    %651 = vmatmul.bf16.gmra.mxu0 %v570
    %v652 = vpop.f32.mrf.mxu0
    %v653 = vadd.f32 %v516, %v652
    %v654 = vpop.f32.mrf.mxu0
    %v655 = vadd.f32 %v516, %v654
    %656 = vmatmul.bf16.gmra.mxu0 %v573
    %v657 = vpop.f32.mrf.mxu0
    %v658 = vadd.f32 %v516, %v657
    %v659 = vpop.f32.mrf.mxu0
    %v660 = vadd.f32 %v516, %v659
    %661 = vmatmul.bf16.gmra.mxu0 %v576
    %v662 = vpop.f32.mrf.mxu0
    %v663 = vadd.f32 %v516, %v662
    %v664 = vpop.f32.mrf.mxu0
    %v665 = vadd.f32 %v516, %v664
    %666 = vdwg.mxu0
    %v667 = vmax.f32 %v588, 0.0
    %v668 = vmax.f32 %v590, 0.0
    %v669 = vmax.f32 %v593, 0.0
    %v670 = vmax.f32 %v595, 0.0
    %v671 = vmax.f32 %v598, 0.0
    %v672 = vmax.f32 %v600, 0.0
    %v673 = vmax.f32 %v603, 0.0
    %v674 = vmax.f32 %v605, 0.0
    %v675 = vmax.f32 %v608, 0.0
    %v676 = vmax.f32 %v610, 0.0
    %v677 = vmax.f32 %v613, 0.0
    %v678 = vmax.f32 %v615, 0.0
    %v679 = vmax.f32 %v618, 0.0
    %v680 = vmax.f32 %v620, 0.0
    %v681 = vmax.f32 %v623, 0.0
    %v682 = vmax.f32 %v625, 0.0
    %v683 = vmax.f32 %v628, 0.0
    %v684 = vmax.f32 %v630, 0.0
    %v685 = vmax.f32 %v633, 0.0
    %v686 = vmax.f32 %v635, 0.0
    %v687 = vmax.f32 %v638, 0.0
    %v688 = vmax.f32 %v640, 0.0
    %v689 = vmax.f32 %v643, 0.0
    %v690 = vmax.f32 %v645, 0.0
    %v691 = vmax.f32 %v648, 0.0
    %v692 = vmax.f32 %v650, 0.0
    %v693 = vmax.f32 %v653, 0.0
    %v694 = vmax.f32 %v655, 0.0
    %v695 = vmax.f32 %v658, 0.0
    %v696 = vmax.f32 %v660, 0.0
    %v697 = vmax.f32 %v663, 0.0
    %v698 = vmax.f32 %v665, 0.0
    %v699 = vpack.c.bf16 %v668, %v667
    %v700 = vpack.c.bf16 %v670, %v669
    %v701 = vpack.c.bf16 %v672, %v671
    %v702 = vpack.c.bf16 %v674, %v673
    %v703 = vpack.c.bf16 %v676, %v675
    %v704 = vpack.c.bf16 %v678, %v677
    %v705 = vpack.c.bf16 %v680, %v679
    %v706 = vpack.c.bf16 %v682, %v681
    %v707 = vpack.c.bf16 %v684, %v683
    %v708 = vpack.c.bf16 %v686, %v685
    %v709 = vpack.c.bf16 %v688, %v687
    %v710 = vpack.c.bf16 %v690, %v689
    %v711 = vpack.c.bf16 %v692, %v691
    %v712 = vpack.c.bf16 %v694, %v693
    %v713 = vpack.c.bf16 %v696, %v695
    %v714 = vpack.c.bf16 %v698, %v697
    %v715 = vld [vmem:[%s7] sm:$0xf]
    %v716 = vld [vmem:[%s7 + $0x4] sm:$0xf]
    %v717 = vld [vmem:[%s7 + $0x8] sm:$0xf]
    %v718 = vld [vmem:[%s7 + $0xc] sm:$0xf]
    %v719 = vld [vmem:[%s7 + $0x10] sm:$0xf]
    %v720 = vld [vmem:[%s7 + $0x14] sm:$0xf]
    %v721 = vld [vmem:[%s7 + $0x18] sm:$0xf]
    %v722 = vld [vmem:[%s7 + $0x1c] sm:$0xf]
    %v723 = vld [vmem:[%s8] sm:$0x1]
    %v725 = vperm.slane %v723, 0
    %v735 = vunpack.c.l.b16 %v715
    %v736 = vunpack.c.l.b16 %v716
    %v737 = vunpack.c.l.b16 %v717
    %v738 = vunpack.c.l.b16 %v718
    %v739 = vunpack.c.l.b16 %v719
    %v740 = vunpack.c.l.b16 %v720
    %v741 = vunpack.c.l.b16 %v721
    %v742 = vunpack.c.l.b16 %v722
    %v743 = vpack.c.b16 %v736, %v735
    %v744 = vpack.c.b16 %v738, %v737
    %v745 = vpack.c.b16 %v740, %v739
    %v746 = vpack.c.b16 %v742, %v741
    %v752 = vsel %vm324, %v699, 0
    %v755 = vsel %vm324, %v700, 0
    %v758 = vsel %vm324, %v701, 0
    %v761 = vsel %vm324, %v702, 0
    %v764 = vsel %vm324, %v703, 0
    %v767 = vsel %vm324, %v704, 0
    %v770 = vsel %vm324, %v705, 0
    %v773 = vsel %vm324, %v706, 0
    %v776 = vsel %vm324, %v707, 0
    %v779 = vsel %vm324, %v708, 0
    %v782 = vsel %vm324, %v709, 0
    %v785 = vsel %vm324, %v710, 0
    %v788 = vsel %vm324, %v711, 0
    %v791 = vsel %vm324, %v712, 0
    %v794 = vsel %vm324, %v713, 0
    %v797 = vsel %vm324, %v714, 0
    %799 = vmatpush.bf16.msra.mxu0 0
    %800 = vmatpush.bf16.msra.mxu0 0
    %801 = vmatpush.bf16.msra.mxu0 0
    %802 = vmatpush.bf16.msra.mxu0 0
    %803 = vmatpush.bf16.msra.mxu0 %v746
    %804 = vmatpush.bf16.msra.mxu0 %v745
    %805 = vmatpush.bf16.msra.mxu0 %v744
    %806 = vmatpush.bf16.msra.mxu0 %v743
    %807 = vmatmul.bf16.gmra.mxu0 %v752
    %v808 = vpop.f32.mrf.mxu0
    %v809 = vadd.f32 %v725, %v808
    %v810 = vpop.f32.mrf.mxu0
    %v811 = vadd.f32 %v725, %v810
    %812 = vmatmul.bf16.gmra.mxu0 %v755
    %v813 = vpop.f32.mrf.mxu0
    %v814 = vadd.f32 %v725, %v813
    %v815 = vpop.f32.mrf.mxu0
    %v816 = vadd.f32 %v725, %v815
    %817 = vmatmul.bf16.gmra.mxu0 %v758
    %v818 = vpop.f32.mrf.mxu0
    %v819 = vadd.f32 %v725, %v818
    %v820 = vpop.f32.mrf.mxu0
    %v821 = vadd.f32 %v725, %v820
    %822 = vmatmul.bf16.gmra.mxu0 %v761
    %v823 = vpop.f32.mrf.mxu0
    %v824 = vadd.f32 %v725, %v823
    %v825 = vpop.f32.mrf.mxu0
    %v826 = vadd.f32 %v725, %v825
    %827 = vmatmul.bf16.gmra.mxu0 %v764
    %v828 = vpop.f32.mrf.mxu0
    %v829 = vadd.f32 %v725, %v828
    %v830 = vpop.f32.mrf.mxu0
    %v831 = vadd.f32 %v725, %v830
    %832 = vmatmul.bf16.gmra.mxu0 %v767
    %v833 = vpop.f32.mrf.mxu0
    %v834 = vadd.f32 %v725, %v833
    %v835 = vpop.f32.mrf.mxu0
    %v836 = vadd.f32 %v725, %v835
    %837 = vmatmul.bf16.gmra.mxu0 %v770
    %v838 = vpop.f32.mrf.mxu0
    %v839 = vadd.f32 %v725, %v838
    %v840 = vpop.f32.mrf.mxu0
    %v841 = vadd.f32 %v725, %v840
    %842 = vmatmul.bf16.gmra.mxu0 %v773
    %v843 = vpop.f32.mrf.mxu0
    %v844 = vadd.f32 %v725, %v843
    %v845 = vpop.f32.mrf.mxu0
    %v846 = vadd.f32 %v725, %v845
    %847 = vmatmul.bf16.gmra.mxu0 %v776
    %v848 = vpop.f32.mrf.mxu0
    %v849 = vadd.f32 %v725, %v848
    %v850 = vpop.f32.mrf.mxu0
    %v851 = vadd.f32 %v725, %v850
    %852 = vmatmul.bf16.gmra.mxu0 %v779
    %v853 = vpop.f32.mrf.mxu0
    %v854 = vadd.f32 %v725, %v853
    %v855 = vpop.f32.mrf.mxu0
    %v856 = vadd.f32 %v725, %v855
    %857 = vmatmul.bf16.gmra.mxu0 %v782
    %v858 = vpop.f32.mrf.mxu0
    %v859 = vadd.f32 %v725, %v858
    %v860 = vpop.f32.mrf.mxu0
    %v861 = vadd.f32 %v725, %v860
    %862 = vmatmul.bf16.gmra.mxu0 %v785
    %v863 = vpop.f32.mrf.mxu0
    %v864 = vadd.f32 %v725, %v863
    %v865 = vpop.f32.mrf.mxu0
    %v866 = vadd.f32 %v725, %v865
    %867 = vmatmul.bf16.gmra.mxu0 %v788
    %v868 = vpop.f32.mrf.mxu0
    %v869 = vadd.f32 %v725, %v868
    %v870 = vpop.f32.mrf.mxu0
    %v871 = vadd.f32 %v725, %v870
    %872 = vmatmul.bf16.gmra.mxu0 %v791
    %v873 = vpop.f32.mrf.mxu0
    %v874 = vadd.f32 %v725, %v873
    %v875 = vpop.f32.mrf.mxu0
    %v876 = vadd.f32 %v725, %v875
    %877 = vmatmul.bf16.gmra.mxu0 %v794
    %v878 = vpop.f32.mrf.mxu0
    %v879 = vadd.f32 %v725, %v878
    %v880 = vpop.f32.mrf.mxu0
    %v881 = vadd.f32 %v725, %v880
    %882 = vmatmul.bf16.gmra.mxu0 %v797
    %v883 = vpop.f32.mrf.mxu0
    %v884 = vadd.f32 %v725, %v883
    %v885 = vpop.f32.mrf.mxu0
    %v886 = vadd.f32 %v725, %v885
    %887 = vdwg.mxu0
    %888 = vxpose.xlu0.b32.start [1/16] %v809, 128
    %889 = vxpose.xlu0.b32.cont [2/16] %v811, 128
    %890 = vxpose.xlu0.b32.cont [3/16] %v814, 128
    %891 = vxpose.xlu0.b32.cont [4/16] %v816, 128
    %892 = vxpose.xlu0.b32.cont [5/16] %v819, 128
    %893 = vxpose.xlu0.b32.cont [6/16] %v821, 128
    %894 = vxpose.xlu0.b32.cont [7/16] %v824, 128
    %895 = vxpose.xlu0.b32.cont [8/16] %v826, 128
    %896 = vxpose.xlu0.b32.cont [9/16] %v829, 128
    %897 = vxpose.xlu0.b32.cont [10/16] %v831, 128
    %898 = vxpose.xlu0.b32.cont [11/16] %v834, 128
    %899 = vxpose.xlu0.b32.cont [12/16] %v836, 128
    %900 = vxpose.xlu0.b32.cont [13/16] %v839, 128
    %901 = vxpose.xlu0.b32.cont [14/16] %v841, 128
    %902 = vxpose.xlu0.b32.cont [15/16] %v844, 128
    %903 = vxpose.xlu0.b32.end [16/16] %v846, 128
    %v904 = vpop.trf.xlu0
    %v905 = vpop.trf.xlu0
    %v906 = vpop.trf.xlu0
    %v907 = vpop.trf.xlu0
    %v908 = vpop.trf.xlu0
    %v909 = vpop.trf.xlu0
    %v910 = vpop.trf.xlu0
    %v911 = vpop.trf.xlu0
    %v912 = vpop.trf.xlu0
    %v913 = vpop.trf.xlu0
    %v914 = vpop.trf.xlu0
    %v915 = vpop.trf.xlu0
    %v916 = vpop.trf.xlu0
    %v917 = vpop.trf.xlu0
    %v918 = vpop.trf.xlu0
    %v919 = vpop.trf.xlu0
    %920 = vxpose.xlu0.b32.start [1/16] %v849, 128
    %921 = vxpose.xlu0.b32.cont [2/16] %v851, 128
    %922 = vxpose.xlu0.b32.cont [3/16] %v854, 128
    %923 = vxpose.xlu0.b32.cont [4/16] %v856, 128
    %924 = vxpose.xlu0.b32.cont [5/16] %v859, 128
    %925 = vxpose.xlu0.b32.cont [6/16] %v861, 128
    %926 = vxpose.xlu0.b32.cont [7/16] %v864, 128
    %927 = vxpose.xlu0.b32.cont [8/16] %v866, 128
    %928 = vxpose.xlu0.b32.cont [9/16] %v869, 128
    %929 = vxpose.xlu0.b32.cont [10/16] %v871, 128
    %930 = vxpose.xlu0.b32.cont [11/16] %v874, 128
    %931 = vxpose.xlu0.b32.cont [12/16] %v876, 128
    %932 = vxpose.xlu0.b32.cont [13/16] %v879, 128
    %933 = vxpose.xlu0.b32.cont [14/16] %v881, 128
    %934 = vxpose.xlu0.b32.cont [15/16] %v884, 128
    %935 = vxpose.xlu0.b32.end [16/16] %v886, 128
    %v936 = vpop.trf.xlu0
    %v937 = vpop.trf.xlu0
    %v938 = vpop.trf.xlu0
    %v939 = vpop.trf.xlu0
    %v940 = vpop.trf.xlu0
    %v941 = vpop.trf.xlu0
    %v942 = vpop.trf.xlu0
    %v943 = vpop.trf.xlu0
    %v944 = vpop.trf.xlu0
    %v945 = vpop.trf.xlu0
    %v946 = vpop.trf.xlu0
    %v947 = vpop.trf.xlu0
    %v948 = vpop.trf.xlu0
    %v949 = vpop.trf.xlu0
    %v950 = vpop.trf.xlu0
    %v951 = vpop.trf.xlu0
    %v953 = vrot.slane %v936, 7
    %vm955 = vcmask 1040384
    %v956 = vsel %vm955, %v904, %v953
    %v957 = vmul.f32 %v956, 0.5
    %v958 = vtanh.pop %v957
    %v959 = vadd.f32 %v958, 1.0
    %v960 = vmul.f32 %v959, 0.5
    %961 = vst [vmem:[#allocation2] sm:$0x3] %v960
    // Predicated region
    $region38: #{tpu_custom_call.1} parent=1 // pred_check
      _
    $region39: #{tpu_custom_call.1} parent=1 // pred_check_branch
      %963 = sbr.rel (0) target = $region41
    $region40: #{tpu_custom_call.1} parent=1 // pred_region
      %965 = vsyncadd [#allocation3], 0
      %s967 = sshll.u32 [#allocation2], 4
      %s968 = int_to_ptr.vmem [resolvable:$true] %s967
      %s969 = sshll.u32 %s9, 4
      %s970 = int_to_ptr.hbm [resolvable:$true] %s969
      %972 = dma.vmem_to_hbm [thread:$0]  %s968, 32, %s970, [#allocation3]
    $region41: #{tpu_custom_call.1} parent=1 // pred_fallthru
      _
    // Predicated region
    $region42: #{tpu_custom_call.1} parent=1 // pred_check
      _
    $region43: #{tpu_custom_call.1} parent=1 // pred_check_branch
      %974 = sbr.rel (0) target = $region45
    $region44: #{tpu_custom_call.1} parent=1 // pred_region
      %976 = dma.done [#allocation3], 32
    $region45: #{tpu_custom_call.1} parent=1 // pred_fallthru
      _
    %977 = vsyncpa [#allocation3], 1

</llo_original>
